<compile_context>
chip_gen: v6e
topology: v6e:2x2x1
jax: 0.10.0
libtpu: 0.0.40
codegen_flags: <defaults>
</compile_context>

<pallas_src>
import math
import functools

import jax
import jax.numpy as jnp
from jax import lax
from jax.experimental import pallas as pl
from jax.experimental.pallas import tpu as pltpu

EPS = 1e-6
E = math.e
_LANES = 128   # pad the token axis to a lane multiple (MXU / store alignment)


def _round_up(n, m):
    return ((n + m - 1) // m) * m


def _pick_block_batch(batch, target):
    """Largest divisor of `batch` <= target, preferring an even grid length (v7x megacore)."""
    target = max(1, min(batch, target))
    divs = [d for d in range(1, target + 1) if batch % d == 0]
    even = [d for d in divs if (batch // d) % 2 == 0]
    return max(even) if even else max(divs)


def _vmem_cap_bytes():
    # Generation-aware cap: ~0.78x of physical per-core VMEM (v7x: 64 MiB -> ~50 MiB,
    # v5e/v6e: 128 MiB -> ~100 MiB).  Conservative fallback if the query fails.
    try:
        cap = int(pltpu.get_tpu_info().vmem_capacity_bytes)
        return max(32 << 20, int(0.78 * cap))
    except Exception:
        return 48 << 20


def _vmem_limit_bytes(block_bytes, n_rows, n_cols, c):
    nn = 8 * n_rows * n_cols * 4            # simT / valid / tie / wT (+ unroll overlap), f32
    nc = 6 * (n_rows + n_cols) * c * 4      # f32 copies, normalized operands, agg, out
    est = 2 * block_bytes + nn + nc + (8 << 20)   # double-buffered blocks + Mosaic scratch
    return int(min(_vmem_cap_bytes(), max(32 << 20, est)))


# ----------------------------------------------------------------------------------------
# Kernels
# ----------------------------------------------------------------------------------------
def _tps_train_kernel(x_ref, keep_ref, pruned_ref, o_ref, *,
                      temperature, l2_norm, bf16_sim, bf16_agg):
    # x_ref: (Bb, N, C), keep_ref: (Bb, N, 1), pruned_ref: (Bb, 1, N)
    Bb, N, _ = x_ref.shape
    inv_t = 1.0 / float(temperature)
    sim_dt = jnp.bfloat16 if bf16_sim else jnp.float32
    agg_dt = jnp.bfloat16 if bf16_agg else jnp.float32

    # Hoisted: identical for every sub-batch element of this grid step.
    not_diag = (lax.broadcasted_iota(jnp.int32, (N, N), 0)
                != lax.broadcasted_iota(jnp.int32, (N, N), 1))

    def body(bi, carry):
        x_in = x_ref[bi]                                     # (N, C)
        x = x_in.astype(jnp.float32)
        keep = keep_ref[bi].astype(jnp.float32)              # (N, 1): masks rows of simT
        pruned = pruned_ref[bi].astype(jnp.float32)          # (1, N): per-source scale

        if l2_norm:
            ss = jnp.sum(x * x, axis=-1, keepdims=True)
            xn = x * (1.0 / (jnp.sqrt(ss) + EPS))            # only N scalar divides
        else:
            xn = x
        xs = xn * inv_t if temperature != 1.0 else xn        # fold 1/T into one operand

        # Unmasked cosine matrix is symmetric: one A@A^T gives the transposed similarity
        # simT[j, i] == cos_sim[i, j] directly -> no XLU transposes anywhere.
        simT = lax.dot_general(xs.astype(sim_dt), xn.astype(sim_dt),
                               dimension_numbers=(((1,), (1,)), ((), ())),
                               preferred_element_type=jnp.float32)       # (N, N)
        # Single fused select: eye mask + keep mask (+ pad tokens, which carry keep == 0).
        # The reference's -100/T-on-diag vs -100 distinction only matters for ~exp(-100)
        # weights in fully-masked rows, i.e. it is numerically irrelevant.
        simT = jnp.where(jnp.logical_and(not_diag, keep != 0.0), simT, -100.0)

        # reference row-max over cos_sim[i, :]  ==  column max over simT[:, i]
        sim_th = jnp.max(simT, axis=0, keepdims=True)                    # (1, N)
        r = pruned * jnp.exp(sim_th)                                     # exp on N values only
        wT = jnp.where(simT == sim_th, r, 0.0)                           # (N, N), one select

        denom = E + jnp.sum(wT, axis=1, keepdims=True)                   # (N, 1), f32-exact
        agg = lax.dot_general(wT.astype(agg_dt), x_in.astype(agg_dt),
                              dimension_numbers=(((1,), (0,)), ((), ())),
                              preferred_element_type=jnp.float32)        # (N, C)
        out = (E * x + agg) * pl.reciprocal(denom, approx=True)          # no N*C divides
        o_ref[bi] = out.astype(o_ref.dtype)
        return carry

    lax.fori_loop(0, Bb, body, 0, unroll=True)


def _tps_eval_kernel(x_ref, y_ref, o_ref, *,
                     temperature, l2_norm, bf16_sim, bf16_agg, nx_real, ny_real):
    # x_ref: (Bb, Nx, C), y_ref: (Bb, Ny, C)
    Bb, Nx, _ = x_ref.shape
    Ny = y_ref.shape[1]
    inv_t = 1.0 / float(temperature)
    sim_dt = jnp.bfloat16 if bf16_sim else jnp.float32
    agg_dt = jnp.bfloat16 if bf16_agg else jnp.float32

    need_pad_mask = (nx_real != Nx) or (ny_real != Ny)
    pad_valid = None
    if need_pad_mask:
        # Compile-time pad mask: zero-padded, l2-normalized rows give sim = 0 which could
        # otherwise win the argmax over negative cosines.  Hoisted out of the batch loop.
        pad_valid = jnp.logical_and(
            lax.broadcasted_iota(jnp.int32, (Nx, Ny), 0) < nx_real,
            lax.broadcasted_iota(jnp.int32, (Nx, Ny), 1) < ny_real)

    def body(bi, carry):
        x_in = x_ref[bi]                                     # (Nx, C)
        y_in = y_ref[bi]                                     # (Ny, C)
        x = x_in.astype(jnp.float32)
        y = y_in.astype(jnp.float32)

        if l2_norm:
            xn = x * (1.0 / (jnp.sqrt(jnp.sum(x * x, axis=-1, keepdims=True)) + EPS))
            yn = y * (1.0 / (jnp.sqrt(jnp.sum(y * y, axis=-1, keepdims=True)) + EPS))
        else:
            xn, yn = x, y
        ys = yn * inv_t if temperature != 1.0 else yn

        # simT[j_x, i_y] == cos_sim[i_y, j_x] (reference computes yn @ xn^T; build the
        # transpose directly so the denominator is a plain row sum in (Nx, 1) layout).
        simT = lax.dot_general(xn.astype(sim_dt), ys.astype(sim_dt),
                               dimension_numbers=(((1,), (1,)), ((), ())),
                               preferred_element_type=jnp.float32)       # (Nx, Ny)
        if need_pad_mask:
            simT = jnp.where(pad_valid, simT, -1e30)

        sim_th = jnp.max(simT, axis=0, keepdims=True)                    # (1, Ny)
        r = jnp.exp(sim_th)                                              # exp(-1e30) -> 0 for pads
        wT = jnp.where(simT == sim_th, r, 0.0)                           # (Nx, Ny)

        denom = E + jnp.sum(wT, axis=1, keepdims=True)                   # (Nx, 1)
        agg = lax.dot_general(wT.astype(agg_dt), y_in.astype(agg_dt),
                              dimension_numbers=(((1,), (0,)), ((), ())),
                              preferred_element_type=jnp.float32)        # (Nx, C)
        out = (E * x + agg) * pl.reciprocal(denom, approx=True)
        o_ref[bi] = out.astype(o_ref.dtype)
        return carry

    lax.fori_loop(0, Bb, body, 0, unroll=True)


# ----------------------------------------------------------------------------------------
# Wrappers
# ----------------------------------------------------------------------------------------
def tps_forward_train(x, keep_decision, pruned_decision, *, temperature=1.0, l2_norm=True,
                      block_batch=8, bf16_sim=None, bf16_agg=True):
    B, N, C = x.shape
    if bf16_sim is None:
        bf16_sim = bool(x.dtype == jnp.bfloat16)   # keep f32 ties bit-faithful for f32 I/O
    Np = _round_up(N, _LANES)
    pad = Np - N

    x_p = jnp.pad(x, ((0, 0), (0, pad), (0, 0))) if pad else x
    # Pad tokens carry keep = 0 and pruned = 0 -> results for real tokens are unchanged.
    keep_col = jnp.pad(keep_decision.reshape(B, N, 1).astype(jnp.float32),
                       ((0, 0), (0, pad), (0, 0))) if pad else \
        keep_decision.reshape(B, N, 1).astype(jnp.float32)
    pruned_row = jnp.pad(pruned_decision.reshape(B, 1, N).astype(jnp.float32),
                         ((0, 0), (0, 0), (0, pad))) if pad else \
        pruned_decision.reshape(B, 1, N).astype(jnp.float32)

    Bb = _pick_block_batch(B, block_batch)
    itemsize = x.dtype.itemsize
    block_bytes = Bb * (2 * Np * C * itemsize + 2 * Np * 4)
    kernel = functools.partial(_tps_train_kernel, temperature=float(temperature),
                               l2_norm=bool(l2_norm), bf16_sim=bf16_sim, bf16_agg=bf16_agg)

    out_p = pl.pallas_call(
        kernel,
        out_shape=jax.ShapeDtypeStruct((B, Np, C), x.dtype),
        grid_spec=pltpu.PrefetchScalarGridSpec(
            num_scalar_prefetch=0,
            grid=(B // Bb,),
            in_specs=[
                pl.BlockSpec((Bb, Np, C), lambda g: (g, 0, 0)),
                pl.BlockSpec((Bb, Np, 1), lambda g: (g, 0, 0)),
                pl.BlockSpec((Bb, 1, Np), lambda g: (g, 0, 0)),
            ],
            out_specs=pl.BlockSpec((Bb, Np, C), lambda g: (g, 0, 0)),
        ),
        compiler_params=pltpu.CompilerParams(
            dimension_semantics=("parallel",),
            vmem_limit_bytes=_vmem_limit_bytes(block_bytes, Np, Np, C),
        ),
    )(x_p, keep_col, pruned_row)
    return out_p[:, :N, :] if pad else out_p


def tps_forward_eval(x, y, *, temperature=1.0, l2_norm=True,
                     block_batch=8, bf16_sim=None, bf16_agg=True):
    B, Nx, C = x.shape
    By, Ny, Cy = y.shape
    assert By == B and Cy == C
    if bf16_sim is None:
        bf16_sim = bool(x.dtype == jnp.bfloat16)
    Nxp = _round_up(Nx, _LANES)
    Nyp = _round_up(Ny, _LANES)

    x_p = jnp.pad(x, ((0, 0), (0, Nxp - Nx), (0, 0))) if Nxp != Nx else x
    y_p = jnp.pad(y, ((0, 0), (0, Nyp - Ny), (0, 0))) if Nyp != Ny else y

    Bb = _pick_block_batch(B, block_batch)
    itemsize = x.dtype.itemsize
    block_bytes = Bb * (2 * Nxp * C + Nyp * C) * itemsize
    kernel = functools.partial(_tps_eval_kernel, temperature=float(temperature),
                               l2_norm=bool(l2_norm), bf16_sim=bf16_sim, bf16_agg=bf16_agg,
                               nx_real=Nx, ny_real=Ny)

    out_p = pl.pallas_call(
        kernel,
        out_shape=jax.ShapeDtypeStruct((B, Nxp, C), x.dtype),
        grid_spec=pltpu.PrefetchScalarGridSpec(
            num_scalar_prefetch=0,
            grid=(B // Bb,),
            in_specs=[
                pl.BlockSpec((Bb, Nxp, C), lambda g: (g, 0, 0)),
                pl.BlockSpec((Bb, Nyp, C), lambda g: (g, 0, 0)),
            ],
            out_specs=pl.BlockSpec((Bb, Nxp, C), lambda g: (g, 0, 0)),
        ),
        compiler_params=pltpu.CompilerParams(
            dimension_semantics=("parallel",),
            vmem_limit_bytes=_vmem_limit_bytes(block_bytes, Nxp, Nyp, C),
        ),
    )(x_p, y_p)
    return out_p[:, :Nx, :] if Nxp != Nx else out_p


class TPSModule:
    """JAX/Pallas port of the PyTorch TPSModule (no learnable parameters).

    Note: assumes binary {0,1} keep/pruned masks (as produced by the gating network);
    for fractional pruned p the reference computes exp(p*sim)*p while this kernel
    computes p*exp(sim).
    """

    def __init__(self, l2_norm=True, temperature=1.0):
        self.l2_norm = l2_norm
        self.temperature = temperature
        self.training = True  # matches nn.Module default

    def __call__(self, x, y, current_keep_decision, current_pruned_decision,
                 relative_dist=None):
        # relative_dist is unused in the reference forward.
        if self.training:
            return tps_forward_train(x, current_keep_decision, current_pruned_decision,
                                     temperature=self.temperature, l2_norm=self.l2_norm)
        return tps_forward_eval(x, y, temperature=self.temperature, l2_norm=self.l2_norm)


# ----------------------------------------------------------------------------------------
# Pure-JAX reference (mirrors the PyTorch forward) and self-test
# ----------------------------------------------------------------------------------------
def _tps_reference(x, y, keep, pruned, *, training, temperature, l2_norm):
    x = x.astype(jnp.float32)
    y = y.astype(jnp.float32)
    B, N, _ = x.shape
    hp = lax.Precision.HIGHEST

    def norm(a):
        if not l2_norm:
            return a
        return a / (jnp.sqrt(jnp.sum(a * a, axis=-1, keepdims=True)) + EPS)

    if training:
        xn = norm(x)
        sim = jnp.einsum("bic,bjc->bij", xn, xn, precision=hp)
        sim = jnp.where(jnp.eye(N, dtype=bool)[None], -100.0, sim)
        sim = sim / temperature
        sim = jnp.where(keep.reshape(B, 1, N) != 0, sim, -100.0)
        src = x
    else:
        xn, yn = norm(x), norm(y)
        sim = jnp.einsum("bic,bjc->bij", yn, xn, precision=hp) / temperature
        src = y
    sim_th = jnp.max(sim, axis=2, keepdims=True)
    mask = (sim == sim_th).astype(jnp.float32)
    if training:
        mask = mask * pruned.reshape(B, N, 1)
    cos = mask * sim
    mask_t = jnp.swapaxes(mask, 1, 2)
    cos_t = jnp.swapaxes(cos, 1, 2)
    numer = jnp.exp(cos_t) * mask_t
    denom = E + jnp.sum(numer, axis=-1, keepdims=True)
    return x * (E / denom) + jnp.einsum("bij,bjc->bic", numer / denom, src, precision=hp)


if __name__ == "__main__":
    def _check(B, N, C, key):
        kx, ky, kd = jax.random.split(key, 3)
        x = jax.random.normal(kx, (B, N, C), dtype=jnp.float32)
        y = jax.random.normal(ky, (B, N, C), dtype=jnp.float32)
        keep = jax.random.bernoulli(kd, 0.5, (B, N, 1)).astype(jnp.float32)
        pruned = 1.0 - keep  # pruned tokens are the complement of kept tokens

        mod = TPSModule(l2_norm=True, temperature=1.0)

        mod.training = True   # training branch (module default)
        out_train = jax.block_until_ready(mod(x, y, keep, pruned))
        mod.training = False  # eval branch
        out_eval = jax.block_until_ready(mod(x, y, keep, pruned))

        ref_train = _tps_reference(x, y, keep, pruned, training=True,
                                   temperature=1.0, l2_norm=True)
        ref_eval = _tps_reference(x, y, keep, pruned, training=False,
                                  temperature=1.0, l2_norm=True)

        assert out_train.shape == (B, N, C) and out_eval.shape == (B, N, C)
        assert bool(jnp.allclose(out_train, ref_train, rtol=2e-2, atol=2e-2)), (B, "train")
        assert bool(jnp.allclose(out_eval, ref_eval, rtol=2e-2, atol=2e-2)), (B, "eval")

    key = jax.random.PRNGKey(0)
    k1, k2 = jax.random.split(key)
    _check(2, 8, 32, k1)   # grid=(2,), Bb=1 (even grid for v7x megacore)
    _check(8, 8, 32, k2)   # grid=(2,), Bb=4 -> exercises the batch-packed fori_loop path
    print("KERNEL_OK")
</pallas_src>

<mosaic_0001>
module attributes {stable_mosaic.version = 11 : i64} {
  func.func @_tps_train_kernel(%arg0: i32, %arg1: memref<1x128x32xf32, #tpu.memory_space<vmem>>, %arg2: memref<1x128x1xf32, #tpu.memory_space<vmem>>, %arg3: memref<1x1x128xf32, #tpu.memory_space<vmem>>, %arg4: memref<1x128x32xf32, #tpu.memory_space<vmem>>) attributes {dimension_semantics = [#tpu.dimension_semantics<parallel>], iteration_bounds = array<i64: 2>, scalar_prefetch = 0 : i64, scratch_operands = 0 : i64, tpu.core_type = #tpu.core_type<tc>, window_params = [{transform_indices = @transform_0, window_bounds = array<i64: 1, 128, 32>}, {transform_indices = @transform_1, window_bounds = array<i64: 1, 128, 1>}, {transform_indices = @transform_2, window_bounds = array<i64: 1, 1, 128>}, {transform_indices = @transform_3, window_bounds = array<i64: 1, 128, 32>}]} {
    %0 = tpu.iota {dimensions = array<i32: 0>} : vector<128x128xi32>
    %1 = tpu.iota {dimensions = array<i32: 1>} : vector<128x128xi32>
    %2 = arith.cmpi ne, %0, %1 : vector<128x128xi32>
    %c0_i32 = arith.constant 0 : i32
    %3 = arith.index_cast %c0_i32 : i32 to index
    %c0 = arith.constant 0 : index
    %c0_0 = arith.constant 0 : index
    %4 = vector.load %arg1[%3, %c0, %c0_0] : memref<1x128x32xf32, #tpu.memory_space<vmem>>, vector<1x128x32xf32>
    %5 = vector.shape_cast %4 : vector<1x128x32xf32> to vector<128x32xf32>
    %6 = arith.index_cast %c0_i32 : i32 to index
    %c0_1 = arith.constant 0 : index
    %c0_2 = arith.constant 0 : index
    %7 = vector.load %arg2[%6, %c0_1, %c0_2] : memref<1x128x1xf32, #tpu.memory_space<vmem>>, vector<1x128x1xf32>
    %8 = vector.shape_cast %7 : vector<1x128x1xf32> to vector<128x1xf32>
    %9 = arith.index_cast %c0_i32 : i32 to index
    %c0_3 = arith.constant 0 : index
    %c0_4 = arith.constant 0 : index
    %10 = vector.load %arg3[%9, %c0_3, %c0_4] : memref<1x1x128xf32, #tpu.memory_space<vmem>>, vector<1x1x128xf32>
    %11 = vector.shape_cast %10 : vector<1x1x128xf32> to vector<1x128xf32>
    %12 = arith.mulf %5, %5 : vector<128x32xf32>
    %cst = arith.constant dense<0.000000e+00> : vector<128xf32>
    %13 = vector.multi_reduction <add>, %12, %cst [1] : vector<128x32xf32> to vector<128xf32>
    %14 = vector.shape_cast %13 : vector<128xf32> to vector<128x1xf32>
    %15 = math.sqrt %14 : vector<128x1xf32>
    %cst_5 = arith.constant 9.99999997E-7 : f32
    %16 = vector.broadcast %cst_5 : f32 to vector<128x1xf32>
    %17 = arith.addf %15, %16 : vector<128x1xf32>
    %cst_6 = arith.constant 1.000000e+00 : f32
    %18 = vector.broadcast %cst_6 : f32 to vector<128x1xf32>
    %19 = arith.divf %18, %17 : vector<128x1xf32>
    %20 = vector.broadcast %19 : vector<128x1xf32> to vector<128x32xf32>
    %21 = arith.mulf %5, %20 : vector<128x32xf32>
    %cst_7 = arith.constant dense<0.000000e+00> : vector<128x128xf32>
    %22 = tpu.matmul %21, %21, %cst_7 {dimension_numbers = #tpu.dot_dimension_numbers<[1], [1], [0], [0], [0, 0, 1, 0], [], []>} : vector<128x32xf32>, vector<128x32xf32>, vector<128x128xf32> -> vector<128x128xf32>
    %cst_8 = arith.constant 0.000000e+00 : f32
    %23 = vector.broadcast %cst_8 : f32 to vector<128x1xf32>
    %24 = arith.cmpf one, %8, %23 : vector<128x1xf32>
    %25 = vector.broadcast %24 : vector<128x1xi1> to vector<128x128xi1>
    %26 = arith.andi %2, %25 : vector<128x128xi1>
    %cst_9 = arith.constant -1.000000e+02 : f32
    %27 = vector.broadcast %cst_9 : f32 to vector<128x128xf32>
    %28 = arith.select %26, %22, %27 : vector<128x128xi1>, vector<128x128xf32>
    %cst_10 = arith.constant dense<0xFF800000> : vector<128xf32>
    %29 = vector.multi_reduction <maximumf>, %28, %cst_10 [0] : vector<128x128xf32> to vector<128xf32>
    %30 = vector.shape_cast %29 : vector<128xf32> to vector<1x128xf32>
    %31 = math.exp %30 : vector<1x128xf32>
    %32 = arith.mulf %11, %31 : vector<1x128xf32>
    %33 = vector.broadcast %30 : vector<1x128xf32> to vector<128x128xf32>
    %34 = arith.cmpf oeq, %28, %33 : vector<128x128xf32>
    %cst_11 = arith.constant 0.000000e+00 : f32
    %35 = vector.shape_cast %32 : vector<1x128xf32> to vector<1x128xf32>
    %36 = vector.broadcast %35 : vector<1x128xf32> to vector<128x128xf32>
    %37 = vector.broadcast %cst_11 : f32 to vector<128x128xf32>
    %38 = arith.select %34, %36, %37 : vector<128x128xi1>, vector<128x128xf32>
    %cst_12 = arith.constant dense<0.000000e+00> : vector<128xf32>
    %39 = vector.multi_reduction <add>, %38, %cst_12 [1] : vector<128x128xf32> to vector<128xf32>
    %40 = vector.shape_cast %39 : vector<128xf32> to vector<128x1xf32>
    %cst_13 = arith.constant 2.71828175 : f32
    %41 = vector.broadcast %cst_13 : f32 to vector<128x1xf32>
    %42 = arith.addf %41, %40 : vector<128x1xf32>
    %43 = arith.truncf %38 : vector<128x128xf32> to vector<128x128xbf16>
    %44 = arith.truncf %5 : vector<128x32xf32> to vector<128x32xbf16>
    %cst_14 = arith.constant dense<0.000000e+00> : vector<128x32xf32>
    %45 = tpu.matmul %43, %44, %cst_14 {dimension_numbers = #tpu.dot_dimension_numbers<[1], [0], [0], [1], [0, 0, 1, 1], [], []>} : vector<128x128xbf16>, vector<128x32xbf16>, vector<128x32xf32> -> vector<128x32xf32>
    %cst_15 = arith.constant 2.71828175 : f32
    %46 = vector.broadcast %cst_15 : f32 to vector<128x32xf32>
    %47 = arith.mulf %46, %5 : vector<128x32xf32>
    %48 = arith.addf %47, %45 : vector<128x32xf32>
    %49 = tpu.reciprocal %42 {approx = true} : vector<128x1xf32> -> vector<128x1xf32>
    %50 = vector.broadcast %49 : vector<128x1xf32> to vector<128x32xf32>
    %51 = arith.mulf %48, %50 : vector<128x32xf32>
    %52 = arith.index_cast %c0_i32 : i32 to index
    %c0_16 = arith.constant 0 : index
    %c0_17 = arith.constant 0 : index
    %53 = vector.load %arg4[%52, %c0_16, %c0_17] : memref<1x128x32xf32, #tpu.memory_space<vmem>>, vector<1x128x32xf32>
    %54 = vector.shape_cast %53 : vector<1x128x32xf32> to vector<128x32xf32>
    %55 = vector.shape_cast %51 : vector<128x32xf32> to vector<1x128x32xf32>
    tpu.vector_store %arg4[%52, %c0_16, %c0_17], %55 {strides = array<i32>} : memref<1x128x32xf32, #tpu.memory_space<vmem>>, vector<1x128x32xf32>,
    %c1_i32 = arith.constant 1 : i32
    return
  }
  func.func @transform_0(%arg0: i32) -> (i32, i32, i32) {
    %c0_i32 = arith.constant 0 : i32
    %c0_i32_0 = arith.constant 0 : i32
    %c0_i32_1 = arith.constant 0 : i32
    return %arg0, %c0_i32, %c0_i32_0 : i32, i32, i32
  }
  func.func @transform_1(%arg0: i32) -> (i32, i32, i32) {
    %c0_i32 = arith.constant 0 : i32
    %c0_i32_0 = arith.constant 0 : i32
    %c0_i32_1 = arith.constant 0 : i32
    return %arg0, %c0_i32, %c0_i32_0 : i32, i32, i32
  }
  func.func @transform_2(%arg0: i32) -> (i32, i32, i32) {
    %c0_i32 = arith.constant 0 : i32
    %c0_i32_0 = arith.constant 0 : i32
    %c0_i32_1 = arith.constant 0 : i32
    return %arg0, %c0_i32, %c0_i32_0 : i32, i32, i32
  }
  func.func @transform_3(%arg0: i32) -> (i32, i32, i32) {
    %c0_i32 = arith.constant 0 : i32
    %c0_i32_0 = arith.constant 0 : i32
    %c0_i32_1 = arith.constant 0 : i32
    return %arg0, %c0_i32, %c0_i32_0 : i32, i32, i32
  }
}

</mosaic_0001>

<llo_original>
// kernel: tpu_custom_call.1
$region0: #{tpu_custom_call.1}
  #allocation0 [shape = 'u32[]', space=smem, size = 0x4, offset = 0x4, fixed_abs, tag = 'smem constant byte address 0x4 - core index']
  #allocation1 [shape = 'u32[144,128]{1,0:T(1,128)}', space=vmem, size = 0x12000, scoped, tag = 'internal scratch']
  %s0 = inlined_call_operand.vmem [shape: f32[2,128,32], index: 0, kind: input, shape index: {}]
  %s1 = inlined_call_operand.vmem [shape: f32[2,128,1], index: 1, kind: input, shape index: {}]
  %s2 = inlined_call_operand.vmem [shape: f32[2,1,128], index: 2, kind: input, shape index: {}]
  %s3 = inlined_call_operand.vmem [shape: f32[2,128,32], index: 3, kind: output, shape index: {}]
  %s4 = sld [smem:[#allocation0]]
  $region45: #{tpu_custom_call.1} parent=0
    _
  %s6 = ssub.s32 1, %s4
  %s7 = scalar_select 0, %s6, %s4
  loop: start=0, step=1, limit=4
  $region2: #{tpu_custom_call.1} parent=0 // loop_pre_header
    _
  $region3: #{tpu_custom_call.1} parent=0 // loop_header
    %s9 = sphi 0, %s13
    %p10 = scmp.ge.s32.totalorder %s9, 4
    %s19 = sphi 0, %s21
    %s22 = sphi 0, %s19
    %s23 = sphi 0, %s22
    %s39 = sphi 0, %s23
    %s45 = sphi 0, %s47
    %s48 = sphi 0, %s45
    %s49 = sphi 0, %s48
    %s65 = sphi 0, %s49
    %s71 = sphi 0, %s73
    %s74 = sphi 0, %s71
    %s75 = sphi 0, %s74
    %s91 = sphi 0, %s75
    %s97 = sphi 0, %s99
    %s100 = sphi 0, %s97
    %s101 = sphi 0, %s100
    %s117 = sphi 0, %s101
  $region4: #{tpu_custom_call.1} parent=0 // loop_header_branch
    %12 = sbr.rel (%p10) target = $region8
  $region5: #{tpu_custom_call.1} parent=0 // loop_body
    %s14 = ssub.s32 %s9, 1
    %s15 = ssub.s32 %s9, 2
    %s16 = sadd.s32 %s9, 1
    %s17 = ssub.s32 %s9, %s16
    %p18 = scmp.eq.s32.totalorder %s17, 0
    %s20 = sadd.s32 %s19, 1
    %s21 = scalar_select %p18, %s19, %s20
    %p24 = pneg %p18
    %p25 = scmp.eq.s32.totalorder %s9, 1
    %p26 = por %p24, %p25
    %p27 = scmp.ne.s32.totalorder %s19, %s22
    %p28 = scmp.eq.s32.totalorder %s9, 0
    %p29 = por %p27, %p28
    %p30 = scmp.ne.s32.totalorder %s19, %s22
    %p31 = scmp.eq.s32.totalorder %s14, 1
    %p32 = por %p30, %p31
    %p33 = scmp.ne.s32.totalorder %s22, %s23
    %p34 = scmp.eq.s32.totalorder %s14, 0
    %p35 = por %p33, %p34
    %p36 = scmp.ne.s32.totalorder %s22, %s23
    %p37 = scmp.eq.s32.totalorder %s15, 1
    %p38 = por %p36, %p37
    %p40 = scmp.ne.s32.totalorder %s23, %s39
    %p41 = scmp.eq.s32.totalorder %s15, 0
    %p42 = por %p40, %p41
    %s43 = ssub.s32 %s9, %s16
    %p44 = scmp.eq.s32.totalorder %s43, 0
    %s46 = sadd.s32 %s45, 1
    %s47 = scalar_select %p44, %s45, %s46
    %p50 = pneg %p44
    %p51 = scmp.eq.s32.totalorder %s9, 1
    %p52 = por %p50, %p51
    %p53 = scmp.ne.s32.totalorder %s45, %s48
    %p54 = scmp.eq.s32.totalorder %s9, 0
    %p55 = por %p53, %p54
    %p56 = scmp.ne.s32.totalorder %s45, %s48
    %p57 = scmp.eq.s32.totalorder %s14, 1
    %p58 = por %p56, %p57
    %p59 = scmp.ne.s32.totalorder %s48, %s49
    %p60 = scmp.eq.s32.totalorder %s14, 0
    %p61 = por %p59, %p60
    %p62 = scmp.ne.s32.totalorder %s48, %s49
    %p63 = scmp.eq.s32.totalorder %s15, 1
    %p64 = por %p62, %p63
    %p66 = scmp.ne.s32.totalorder %s49, %s65
    %p67 = scmp.eq.s32.totalorder %s15, 0
    %p68 = por %p66, %p67
    %s69 = ssub.s32 %s9, %s16
    %p70 = scmp.eq.s32.totalorder %s69, 0
    %s72 = sadd.s32 %s71, 1
    %s73 = scalar_select %p70, %s71, %s72
    %p76 = pneg %p70
    %p77 = scmp.eq.s32.totalorder %s9, 1
    %p78 = por %p76, %p77
    %p79 = scmp.ne.s32.totalorder %s71, %s74
    %p80 = scmp.eq.s32.totalorder %s9, 0
    %p81 = por %p79, %p80
    %p82 = scmp.ne.s32.totalorder %s71, %s74
    %p83 = scmp.eq.s32.totalorder %s14, 1
    %p84 = por %p82, %p83
    %p85 = scmp.ne.s32.totalorder %s74, %s75
    %p86 = scmp.eq.s32.totalorder %s14, 0
    %p87 = por %p85, %p86
    %p88 = scmp.ne.s32.totalorder %s74, %s75
    %p89 = scmp.eq.s32.totalorder %s15, 1
    %p90 = por %p88, %p89
    %p92 = scmp.ne.s32.totalorder %s75, %s91
    %p93 = scmp.eq.s32.totalorder %s15, 0
    %p94 = por %p92, %p93
    %s95 = ssub.s32 %s9, %s16
    %p96 = scmp.eq.s32.totalorder %s95, 0
    %s98 = sadd.s32 %s97, 1
    %s99 = scalar_select %p96, %s97, %s98
    %p102 = pneg %p96
    %p103 = scmp.eq.s32.totalorder %s9, 1
    %p104 = por %p102, %p103
    %p105 = scmp.ne.s32.totalorder %s97, %s100
    %p106 = scmp.eq.s32.totalorder %s9, 0
    %p107 = por %p105, %p106
    %p108 = scmp.ne.s32.totalorder %s97, %s100
    %p109 = scmp.eq.s32.totalorder %s14, 1
    %p110 = por %p108, %p109
    %p111 = scmp.ne.s32.totalorder %s100, %s101
    %p112 = scmp.eq.s32.totalorder %s14, 0
    %p113 = por %p111, %p112
    %p114 = scmp.ne.s32.totalorder %s100, %s101
    %p115 = scmp.eq.s32.totalorder %s15, 1
    %p116 = por %p114, %p115
    %p118 = scmp.ne.s32.totalorder %s101, %s117
    %p119 = scmp.eq.s32.totalorder %s15, 0
    %p120 = por %p118, %p119
    %p121 = scmp.le.s32.totalorder 1, %s9
    %p122 = scmp.lt.s32.totalorder %s9, 3
    %p123 = pnand %p121, %p122
    %p124 = pneg %p123
    // Predicated region
    $region9: #{tpu_custom_call.1} parent=5 // pred_check
      _
    $region10: #{tpu_custom_call.1} parent=5 // pred_check_branch
      %126 = sbr.rel (%p123) target = $region12
    $region11: #{tpu_custom_call.1} parent=5 // pred_region
      %s127 = ssub.s32 %s9, 1
    $region12: #{tpu_custom_call.1} parent=5 // pred_fallthru
      _
    %p128 = scmp.lt.s32.totalorder %s9, 2
    // Predicated region
    $region13: #{tpu_custom_call.1} parent=5 // pred_check
      %p129 = pneg %p128
    $region14: #{tpu_custom_call.1} parent=5 // pred_check_branch
      %131 = sbr.rel (%p129) target = $region16
    $region15: #{tpu_custom_call.1} parent=5 // pred_region
      // Predicated region
      $region17: #{tpu_custom_call.1} parent=15 // pred_check
        %p132 = pneg %p29
      $region18: #{tpu_custom_call.1} parent=15 // pred_check_branch
        %134 = sbr.rel (%p132) target = $region20
      $region19: #{tpu_custom_call.1} parent=15 // pred_region
        %p135 = scmp.lt.s32.totalorder %s9, 1
        %s136 = scalar_select %p135, %s9, 1
        %s137 = smul.addr %s136, 16
        %s138 = smul.addr %s137, 8
        %s139 = scalar_lea.vmem %s0, %s138
      $region20: #{tpu_custom_call.1} parent=15 // pred_fallthru
        _
      // Predicated region
      $region21: #{tpu_custom_call.1} parent=15 // pred_check
        %p140 = pneg %p55
      $region22: #{tpu_custom_call.1} parent=15 // pred_check_branch
        %142 = sbr.rel (%p140) target = $region24
      $region23: #{tpu_custom_call.1} parent=15 // pred_region
        %p143 = scmp.lt.s32.totalorder %s9, 1
        %s144 = scalar_select %p143, %s9, 1
        %s145 = smul.addr %s144, 16
        %s146 = smul.addr %s145, 8
        %s147 = scalar_lea.vmem %s1, %s146
      $region24: #{tpu_custom_call.1} parent=15 // pred_fallthru
        _
      // Predicated region
      $region25: #{tpu_custom_call.1} parent=15 // pred_check
        %p148 = pneg %p81
      $region26: #{tpu_custom_call.1} parent=15 // pred_check_branch
        %150 = sbr.rel (%p148) target = $region28
      $region27: #{tpu_custom_call.1} parent=15 // pred_region
        %p151 = scmp.lt.s32.totalorder %s9, 1
        %s152 = scalar_select %p151, %s9, 1
        %s153 = scalar_lea.vmem %s2, %s152
      $region28: #{tpu_custom_call.1} parent=15 // pred_fallthru
        _
    $region16: #{tpu_custom_call.1} parent=5 // pred_fallthru
      _
    %p154 = scmp.le.s32.totalorder 1, %s9
    %p155 = scmp.lt.s32.totalorder %s9, 3
    %p156 = pnand %p154, %p155
    %p157 = pneg %p156
    // Predicated region
    $region29: #{tpu_custom_call.1} parent=5 // pred_check
      _
    $region30: #{tpu_custom_call.1} parent=5 // pred_check_branch
      %159 = sbr.rel (%p156) target = $region32
    $region31: #{tpu_custom_call.1} parent=5 // pred_region
      %s160 = ssub.s32 %s9, 1
      %p161 = scmp.lt.s32.totalorder %s14, 1
      %s162 = scalar_select %p161, %s14, 1
      %s163 = smul.addr %s162, 16
      %s164 = smul.addr %s163, 8
      %s165 = scalar_lea.vmem %s0, %s164
      %p166 = pneg %p35
      %p167 = pneg %p32
      %p168 = scmp.lt.s32.totalorder %s14, 1
      %s169 = scalar_select %p168, %s14, 1
      %s170 = smul.addr %s169, 16
      %s171 = smul.addr %s170, 8
      %s172 = scalar_lea.vmem %s1, %s171
      %p173 = pneg %p61
      %p174 = pneg %p58
      %p175 = scmp.lt.s32.totalorder %s14, 1
      %s176 = scalar_select %p175, %s14, 1
      %s177 = scalar_lea.vmem %s2, %s176
      %p178 = pneg %p87
      %p179 = pneg %p84
      %p180 = pneg %p113
      %p181 = pneg %p110
      %p182 = scmp.lt.s32.totalorder %s14, 1
      %s183 = scalar_select %p182, %s14, 1
      %s184 = smul.addr %s183, 16
      %s185 = smul.addr %s184, 8
      %s186 = scalar_lea.vmem %s3, %s185
      %p187 = scmp.lt.s32.totalorder %s14, 1
      %s188 = scalar_select %p187, %s14, 1
      %s189 = smul.addr %s188, 16
      %s190 = smul.addr %s189, 8
      %s191 = scalar_lea.vmem %s0, %s190
      %p192 = scmp.lt.s32.totalorder %s14, 1
      %s193 = scalar_select %p192, %s14, 1
      %s194 = smul.addr %s193, 16
      %s195 = smul.addr %s194, 8
      %s196 = scalar_lea.vmem %s1, %s195
      %p197 = scmp.lt.s32.totalorder %s14, 1
      %s198 = scalar_select %p197, %s14, 1
      %s199 = scalar_lea.vmem %s2, %s198
      %p200 = scmp.lt.s32.totalorder %s14, 1
      %s201 = scalar_select %p200, %s14, 1
      %s202 = smul.addr %s201, 16
      %s203 = smul.addr %s202, 8
      %s204 = scalar_lea.vmem %s3, %s203
      %v206 = vlaneseq
      %v207 = vshrl.u32 %v206, 7
      %v208 = vadd.s32 %v207, 8
      %v209 = vadd.s32 %v207, 16
      %v210 = vadd.s32 %v207, 24
      %v211 = vadd.s32 %v207, 32
      %v212 = vadd.s32 %v207, 40
      %v213 = vadd.s32 %v207, 48
      %v214 = vadd.s32 %v207, 56
      %v215 = vadd.s32 %v207, 64
      %v216 = vadd.s32 %v207, 72
      %v217 = vadd.s32 %v207, 80
      %v218 = vadd.s32 %v207, 88
      %v219 = vadd.s32 %v207, 96
      %v220 = vadd.s32 %v207, 104
      %v221 = vadd.s32 %v207, 112
      %v222 = vadd.s32 %v207, 120
      %v223 = vlaneseq
      %v224 = vand.u32 %v223, 127
      %vm225 = vcmp.ne.s32.totalorder %v207, %v224
      %vm226 = vcmp.ne.s32.totalorder %v208, %v224
      %vm227 = vcmp.ne.s32.totalorder %v209, %v224
      %vm228 = vcmp.ne.s32.totalorder %v210, %v224
      %vm229 = vcmp.ne.s32.totalorder %v211, %v224
      %vm230 = vcmp.ne.s32.totalorder %v212, %v224
      %vm231 = vcmp.ne.s32.totalorder %v213, %v224
      %vm232 = vcmp.ne.s32.totalorder %v214, %v224
      %vm233 = vcmp.ne.s32.totalorder %v215, %v224
      %vm234 = vcmp.ne.s32.totalorder %v216, %v224
      %vm235 = vcmp.ne.s32.totalorder %v217, %v224
      %vm236 = vcmp.ne.s32.totalorder %v218, %v224
      %vm237 = vcmp.ne.s32.totalorder %v219, %v224
      %vm238 = vcmp.ne.s32.totalorder %v220, %v224
      %vm239 = vcmp.ne.s32.totalorder %v221, %v224
      %vm240 = vcmp.ne.s32.totalorder %v222, %v224
      %v241 = vld [vmem:[%s191] sm:$0xff]
      %v242 = vld [vmem:[%s191 + $0x8] sm:$0xff]
      %v243 = vld [vmem:[%s191 + $0x10] sm:$0xff]
      %v244 = vld [vmem:[%s191 + $0x18] sm:$0xff]
      %v245 = vld [vmem:[%s191 + $0x20] sm:$0xff]
      %v246 = vld [vmem:[%s191 + $0x28] sm:$0xff]
      %v247 = vld [vmem:[%s191 + $0x30] sm:$0xff]
      %v248 = vld [vmem:[%s191 + $0x38] sm:$0xff]
      %v249 = vld [vmem:[%s191 + $0x40] sm:$0xff]
      %v250 = vld [vmem:[%s191 + $0x48] sm:$0xff]
      %v251 = vld [vmem:[%s191 + $0x50] sm:$0xff]
      %v252 = vld [vmem:[%s191 + $0x58] sm:$0xff]
      %v253 = vld [vmem:[%s191 + $0x60] sm:$0xff]
      %v254 = vld [vmem:[%s191 + $0x68] sm:$0xff]
      %v255 = vld [vmem:[%s191 + $0x70] sm:$0xff]
      %v256 = vld [vmem:[%s191 + $0x78] sm:$0xff]
      %v257 = vld [vmem:[%s196] sm:$0xff]
      %v258 = vld [vmem:[%s196 + $0x8] sm:$0xff]
      %v259 = vld [vmem:[%s196 + $0x10] sm:$0xff]
      %v260 = vld [vmem:[%s196 + $0x18] sm:$0xff]
      %v261 = vld [vmem:[%s196 + $0x20] sm:$0xff]
      %v262 = vld [vmem:[%s196 + $0x28] sm:$0xff]
      %v263 = vld [vmem:[%s196 + $0x30] sm:$0xff]
      %v264 = vld [vmem:[%s196 + $0x38] sm:$0xff]
      %v265 = vld [vmem:[%s196 + $0x40] sm:$0xff]
      %v266 = vld [vmem:[%s196 + $0x48] sm:$0xff]
      %v267 = vld [vmem:[%s196 + $0x50] sm:$0xff]
      %v268 = vld [vmem:[%s196 + $0x58] sm:$0xff]
      %v269 = vld [vmem:[%s196 + $0x60] sm:$0xff]
      %v270 = vld [vmem:[%s196 + $0x68] sm:$0xff]
      %v271 = vld [vmem:[%s196 + $0x70] sm:$0xff]
      %v272 = vld [vmem:[%s196 + $0x78] sm:$0xff]
      %v273 = vld [vmem:[%s199] sm:$0x1]
      %v274 = vmul.f32 %v241, %v241
      %v275 = vmul.f32 %v242, %v242
      %v276 = vmul.f32 %v243, %v243
      %v277 = vmul.f32 %v244, %v244
      %v278 = vmul.f32 %v245, %v245
      %v279 = vmul.f32 %v246, %v246
      %v280 = vmul.f32 %v247, %v247
      %v281 = vmul.f32 %v248, %v248
      %v282 = vmul.f32 %v249, %v249
      %v283 = vmul.f32 %v250, %v250
      %v284 = vmul.f32 %v251, %v251
      %v285 = vmul.f32 %v252, %v252
      %v286 = vmul.f32 %v253, %v253
      %v287 = vmul.f32 %v254, %v254
      %v288 = vmul.f32 %v255, %v255
      %v289 = vmul.f32 %v256, %v256
      %vm290 = vcmask 261120
      %v291 = vsel %vm290, %v274, 0.0
      %292 = vadd.xlane.f32.xlu0 %v291
      %v293 = vpop.xlane.xlu0 %292
      %v294 = vsel %vm290, %v275, 0.0
      %295 = vadd.xlane.f32.xlu0 %v294
      %v296 = vpop.xlane.xlu0 %295
      %v297 = vsel %vm290, %v276, 0.0
      %298 = vadd.xlane.f32.xlu0 %v297
      %v299 = vpop.xlane.xlu0 %298
      %v300 = vsel %vm290, %v277, 0.0
      %301 = vadd.xlane.f32.xlu0 %v300
      %v302 = vpop.xlane.xlu0 %301
      %v303 = vsel %vm290, %v278, 0.0
      %304 = vadd.xlane.f32.xlu0 %v303
      %v305 = vpop.xlane.xlu0 %304
      %v306 = vsel %vm290, %v279, 0.0
      %307 = vadd.xlane.f32.xlu0 %v306
      %v308 = vpop.xlane.xlu0 %307
      %v309 = vsel %vm290, %v280, 0.0
      %310 = vadd.xlane.f32.xlu0 %v309
      %v311 = vpop.xlane.xlu0 %310
      %v312 = vsel %vm290, %v281, 0.0
      %313 = vadd.xlane.f32.xlu0 %v312
      %v314 = vpop.xlane.xlu0 %313
      %v315 = vsel %vm290, %v282, 0.0
      %316 = vadd.xlane.f32.xlu0 %v315
      %v317 = vpop.xlane.xlu0 %316
      %v318 = vsel %vm290, %v283, 0.0
      %319 = vadd.xlane.f32.xlu0 %v318
      %v320 = vpop.xlane.xlu0 %319
      %v321 = vsel %vm290, %v284, 0.0
      %322 = vadd.xlane.f32.xlu0 %v321
      %v323 = vpop.xlane.xlu0 %322
      %v324 = vsel %vm290, %v285, 0.0
      %325 = vadd.xlane.f32.xlu0 %v324
      %v326 = vpop.xlane.xlu0 %325
      %v327 = vsel %vm290, %v286, 0.0
      %328 = vadd.xlane.f32.xlu0 %v327
      %v329 = vpop.xlane.xlu0 %328
      %v330 = vsel %vm290, %v287, 0.0
      %331 = vadd.xlane.f32.xlu0 %v330
      %v332 = vpop.xlane.xlu0 %331
      %v333 = vsel %vm290, %v288, 0.0
      %334 = vadd.xlane.f32.xlu0 %v333
      %v335 = vpop.xlane.xlu0 %334
      %v336 = vsel %vm290, %v289, 0.0
      %337 = vadd.xlane.f32.xlu0 %v336
      %v338 = vpop.xlane.xlu0 %337
      %v339 = vrsqrt.pop %v293
      %v340 = vmul.f32 %v293, %v339
      %vm341 = vcmp.eq.f32.partialorder %v293, inf
      %v342 = vsel %vm341, %v293, %v340
      %vm343 = vcmp.eq.f32.partialorder %v293, 0.0
      %v344 = vand.u32 %v293, 2147483648
      %v345 = vsel %vm343, %v344, %v342
      %v346 = vrsqrt.pop %v296
      %v347 = vmul.f32 %v296, %v346
      %vm348 = vcmp.eq.f32.partialorder %v296, inf
      %v349 = vsel %vm348, %v296, %v347
      %vm350 = vcmp.eq.f32.partialorder %v296, 0.0
      %v351 = vand.u32 %v296, 2147483648
      %v352 = vsel %vm350, %v351, %v349
      %v353 = vrsqrt.pop %v299
      %v354 = vmul.f32 %v299, %v353
      %vm355 = vcmp.eq.f32.partialorder %v299, inf
      %v356 = vsel %vm355, %v299, %v354
      %vm357 = vcmp.eq.f32.partialorder %v299, 0.0
      %v358 = vand.u32 %v299, 2147483648
      %v359 = vsel %vm357, %v358, %v356
      %v360 = vrsqrt.pop %v302
      %v361 = vmul.f32 %v302, %v360
      %vm362 = vcmp.eq.f32.partialorder %v302, inf
      %v363 = vsel %vm362, %v302, %v361
      %vm364 = vcmp.eq.f32.partialorder %v302, 0.0
      %v365 = vand.u32 %v302, 2147483648
      %v366 = vsel %vm364, %v365, %v363
      %v367 = vrsqrt.pop %v305
      %v368 = vmul.f32 %v305, %v367
      %vm369 = vcmp.eq.f32.partialorder %v305, inf
      %v370 = vsel %vm369, %v305, %v368
      %vm371 = vcmp.eq.f32.partialorder %v305, 0.0
      %v372 = vand.u32 %v305, 2147483648
      %v373 = vsel %vm371, %v372, %v370
      %v374 = vrsqrt.pop %v308
      %v375 = vmul.f32 %v308, %v374
      %vm376 = vcmp.eq.f32.partialorder %v308, inf
      %v377 = vsel %vm376, %v308, %v375
      %vm378 = vcmp.eq.f32.partialorder %v308, 0.0
      %v379 = vand.u32 %v308, 2147483648
      %v380 = vsel %vm378, %v379, %v377
      %v381 = vrsqrt.pop %v311
      %v382 = vmul.f32 %v311, %v381
      %vm383 = vcmp.eq.f32.partialorder %v311, inf
      %v384 = vsel %vm383, %v311, %v382
      %vm385 = vcmp.eq.f32.partialorder %v311, 0.0
      %v386 = vand.u32 %v311, 2147483648
      %v387 = vsel %vm385, %v386, %v384
      %v388 = vrsqrt.pop %v314
      %v389 = vmul.f32 %v314, %v388
      %vm390 = vcmp.eq.f32.partialorder %v314, inf
      %v391 = vsel %vm390, %v314, %v389
      %vm392 = vcmp.eq.f32.partialorder %v314, 0.0
      %v393 = vand.u32 %v314, 2147483648
      %v394 = vsel %vm392, %v393, %v391
      %v395 = vrsqrt.pop %v317
      %v396 = vmul.f32 %v317, %v395
      %vm397 = vcmp.eq.f32.partialorder %v317, inf
      %v398 = vsel %vm397, %v317, %v396
      %vm399 = vcmp.eq.f32.partialorder %v317, 0.0
      %v400 = vand.u32 %v317, 2147483648
      %v401 = vsel %vm399, %v400, %v398
      %v402 = vrsqrt.pop %v320
      %v403 = vmul.f32 %v320, %v402
      %vm404 = vcmp.eq.f32.partialorder %v320, inf
      %v405 = vsel %vm404, %v320, %v403
      %vm406 = vcmp.eq.f32.partialorder %v320, 0.0
      %v407 = vand.u32 %v320, 2147483648
      %v408 = vsel %vm406, %v407, %v405
      %v409 = vrsqrt.pop %v323
      %v410 = vmul.f32 %v323, %v409
      %vm411 = vcmp.eq.f32.partialorder %v323, inf
      %v412 = vsel %vm411, %v323, %v410
      %vm413 = vcmp.eq.f32.partialorder %v323, 0.0
      %v414 = vand.u32 %v323, 2147483648
      %v415 = vsel %vm413, %v414, %v412
      %v416 = vrsqrt.pop %v326
      %v417 = vmul.f32 %v326, %v416
      %vm418 = vcmp.eq.f32.partialorder %v326, inf
      %v419 = vsel %vm418, %v326, %v417
      %vm420 = vcmp.eq.f32.partialorder %v326, 0.0
      %v421 = vand.u32 %v326, 2147483648
      %v422 = vsel %vm420, %v421, %v419
      %v423 = vrsqrt.pop %v329
      %v424 = vmul.f32 %v329, %v423
      %vm425 = vcmp.eq.f32.partialorder %v329, inf
      %v426 = vsel %vm425, %v329, %v424
      %vm427 = vcmp.eq.f32.partialorder %v329, 0.0
      %v428 = vand.u32 %v329, 2147483648
      %v429 = vsel %vm427, %v428, %v426
      %v430 = vrsqrt.pop %v332
      %v431 = vmul.f32 %v332, %v430
      %vm432 = vcmp.eq.f32.partialorder %v332, inf
      %v433 = vsel %vm432, %v332, %v431
      %vm434 = vcmp.eq.f32.partialorder %v332, 0.0
      %v435 = vand.u32 %v332, 2147483648
      %v436 = vsel %vm434, %v435, %v433
      %v437 = vrsqrt.pop %v335
      %v438 = vmul.f32 %v335, %v437
      %vm439 = vcmp.eq.f32.partialorder %v335, inf
      %v440 = vsel %vm439, %v335, %v438
      %vm441 = vcmp.eq.f32.partialorder %v335, 0.0
      %v442 = vand.u32 %v335, 2147483648
      %v443 = vsel %vm441, %v442, %v440
      %v444 = vrsqrt.pop %v338
      %v445 = vmul.f32 %v338, %v444
      %vm446 = vcmp.eq.f32.partialorder %v338, inf
      %v447 = vsel %vm446, %v338, %v445
      %vm448 = vcmp.eq.f32.partialorder %v338, 0.0
      %v449 = vand.u32 %v338, 2147483648
      %v450 = vsel %vm448, %v449, %v447
      %v451 = vadd.f32 %v345, 1e-06
      %v452 = vadd.f32 %v352, 1e-06
      %v453 = vadd.f32 %v359, 1e-06
      %v454 = vadd.f32 %v366, 1e-06
      %v455 = vadd.f32 %v373, 1e-06
      %v456 = vadd.f32 %v380, 1e-06
      %v457 = vadd.f32 %v387, 1e-06
      %v458 = vadd.f32 %v394, 1e-06
      %v459 = vadd.f32 %v401, 1e-06
      %v460 = vadd.f32 %v408, 1e-06
      %v461 = vadd.f32 %v415, 1e-06
      %v462 = vadd.f32 %v422, 1e-06
      %v463 = vadd.f32 %v429, 1e-06
      %v464 = vadd.f32 %v436, 1e-06
      %v465 = vadd.f32 %v443, 1e-06
      %v466 = vadd.f32 %v450, 1e-06
      %v467 = vrcp.pop %v451
      %v468 = vmul.f32 1.0, %v467
      %v469 = vrcp.pop %v452
      %v470 = vmul.f32 1.0, %v469
      %v471 = vrcp.pop %v453
      %v472 = vmul.f32 1.0, %v471
      %v473 = vrcp.pop %v454
      %v474 = vmul.f32 1.0, %v473
      %v475 = vrcp.pop %v455
      %v476 = vmul.f32 1.0, %v475
      %v477 = vrcp.pop %v456
      %v478 = vmul.f32 1.0, %v477
      %v479 = vrcp.pop %v457
      %v480 = vmul.f32 1.0, %v479
      %v481 = vrcp.pop %v458
      %v482 = vmul.f32 1.0, %v481
      %v483 = vrcp.pop %v459
      %v484 = vmul.f32 1.0, %v483
      %v485 = vrcp.pop %v460
      %v486 = vmul.f32 1.0, %v485
      %v487 = vrcp.pop %v461
      %v488 = vmul.f32 1.0, %v487
      %v489 = vrcp.pop %v462
      %v490 = vmul.f32 1.0, %v489
      %v491 = vrcp.pop %v463
      %v492 = vmul.f32 1.0, %v491
      %v493 = vrcp.pop %v464
      %v494 = vmul.f32 1.0, %v493
      %v495 = vrcp.pop %v465
      %v496 = vmul.f32 1.0, %v495
      %v497 = vrcp.pop %v466
      %v498 = vmul.f32 1.0, %v497
      %v499 = vmul.f32 %v241, %v468
      %v500 = vmul.f32 %v242, %v470
      %v501 = vmul.f32 %v243, %v472
      %v502 = vmul.f32 %v244, %v474
      %v503 = vmul.f32 %v245, %v476
      %v504 = vmul.f32 %v246, %v478
      %v505 = vmul.f32 %v247, %v480
      %v506 = vmul.f32 %v248, %v482
      %v507 = vmul.f32 %v249, %v484
      %v508 = vmul.f32 %v250, %v486
      %v509 = vmul.f32 %v251, %v488
      %v510 = vmul.f32 %v252, %v490
      %v511 = vmul.f32 %v253, %v492
      %v512 = vmul.f32 %v254, %v494
      %v513 = vmul.f32 %v255, %v496
      %v514 = vmul.f32 %v256, %v498
      %v516 = vsel %vm290, %v499, 0
      %v519 = vsel %vm290, %v500, 0
      %v522 = vsel %vm290, %v501, 0
      %v525 = vsel %vm290, %v502, 0
      %v528 = vsel %vm290, %v503, 0
      %v531 = vsel %vm290, %v504, 0
      %v534 = vsel %vm290, %v505, 0
      %v537 = vsel %vm290, %v506, 0
      %v540 = vsel %vm290, %v507, 0
      %v543 = vsel %vm290, %v508, 0
      %v546 = vsel %vm290, %v509, 0
      %v549 = vsel %vm290, %v510, 0
      %v552 = vsel %vm290, %v511, 0
      %v555 = vsel %vm290, %v512, 0
      %v558 = vsel %vm290, %v513, 0
      %v561 = vsel %vm290, %v514, 0
      %563 = vmatprep.subr.mxu0 0.0
      %564 = vmatpush1.xpose.msra.mxu0 %v561
      %565 = vmatprep.subr.mxu0 0.0
      %566 = vmatpush1.xpose.msra.mxu0 %v558
      %567 = vmatprep.subr.mxu0 0.0
      %568 = vmatpush1.xpose.msra.mxu0 %v555
      %569 = vmatprep.subr.mxu0 0.0
      %570 = vmatpush1.xpose.msra.mxu0 %v552
      %571 = vmatprep.subr.mxu0 0.0
      %572 = vmatpush1.xpose.msra.mxu0 %v549
      %573 = vmatprep.subr.mxu0 0.0
      %574 = vmatpush1.xpose.msra.mxu0 %v546
      %575 = vmatprep.subr.mxu0 0.0
      %576 = vmatpush1.xpose.msra.mxu0 %v543
      %577 = vmatprep.subr.mxu0 0.0
      %578 = vmatpush1.xpose.msra.mxu0 %v540
      %579 = vmatprep.subr.mxu0 0.0
      %580 = vmatpush1.xpose.msra.mxu0 %v537
      %581 = vmatprep.subr.mxu0 0.0
      %582 = vmatpush1.xpose.msra.mxu0 %v534
      %583 = vmatprep.subr.mxu0 0.0
      %584 = vmatpush1.xpose.msra.mxu0 %v531
      %585 = vmatprep.subr.mxu0 0.0
      %586 = vmatpush1.xpose.msra.mxu0 %v528
      %587 = vmatprep.subr.mxu0 0.0
      %588 = vmatpush1.xpose.msra.mxu0 %v525
      %589 = vmatprep.subr.mxu0 0.0
      %590 = vmatpush1.xpose.msra.mxu0 %v522
      %591 = vmatprep.subr.mxu0 0.0
      %592 = vmatpush1.xpose.msra.mxu0 %v519
      %593 = vmatprep.subr.mxu0 0.0
      %594 = vmatpush1.xpose.msra.mxu0 %v516
      %595 = vmatprep.subr.mxu0 0.0
      %596 = vmatpush2.xpose.msra.mxu0 0.0
      %597 = vmatprep.subr.mxu0 0.0
      %598 = vmatpush2.xpose.msra.mxu0 0.0
      %599 = vmatprep.subr.mxu0 0.0
      %600 = vmatpush2.xpose.msra.mxu0 0.0
      %601 = vmatprep.subr.mxu0 0.0
      %602 = vmatpush2.xpose.msra.mxu0 0.0
      %603 = vmatprep.subr.mxu0 0.0
      %604 = vmatpush2.xpose.msra.mxu0 0.0
      %605 = vmatprep.subr.mxu0 0.0
      %606 = vmatpush2.xpose.msra.mxu0 0.0
      %607 = vmatprep.subr.mxu0 0.0
      %608 = vmatpush2.xpose.msra.mxu0 0.0
      %609 = vmatprep.subr.mxu0 0.0
      %610 = vmatpush2.xpose.msra.mxu0 0.0
      %611 = vmatprep.subr.mxu0 0.0
      %612 = vmatpush2.xpose.msra.mxu0 0.0
      %613 = vmatprep.subr.mxu0 0.0
      %614 = vmatpush2.xpose.msra.mxu0 0.0
      %615 = vmatprep.subr.mxu0 0.0
      %616 = vmatpush2.xpose.msra.mxu0 0.0
      %617 = vmatprep.subr.mxu0 0.0
      %618 = vmatpush2.xpose.msra.mxu0 0.0
      %619 = vmatprep.subr.mxu0 0.0
      %620 = vmatpush2.xpose.msra.mxu0 0.0
      %621 = vmatprep.subr.mxu0 0.0
      %622 = vmatpush2.xpose.msra.mxu0 0.0
      %623 = vmatprep.subr.mxu0 0.0
      %624 = vmatpush2.xpose.msra.mxu0 0.0
      %625 = vmatprep.subr.mxu0 0.0
      %626 = vmatpush2.xpose.msra.mxu0 0.0
      %627 = vmatprep.mubr.f32.mxu0 0.0
      %628 = vmatmul.mubr.f32.gmra.mxu0 %v516
      %v629 = vpop.f32.mrf.mxu0
      %v630 = vadd.f32 0.0, %v629
      %v631 = vpop.f32.mrf.mxu0
      %632 = vmatprep.mubr.f32.mxu0 0.0
      %633 = vmatmul.mubr.f32.gmra.mxu0 %v519
      %v634 = vpop.f32.mrf.mxu0
      %v635 = vadd.f32 0.0, %v634
      %v636 = vpop.f32.mrf.mxu0
      %637 = vmatprep.mubr.f32.mxu0 0.0
      %638 = vmatmul.mubr.f32.gmra.mxu0 %v522
      %v639 = vpop.f32.mrf.mxu0
      %v640 = vadd.f32 0.0, %v639
      %v641 = vpop.f32.mrf.mxu0
      %642 = vmatprep.mubr.f32.mxu0 0.0
      %643 = vmatmul.mubr.f32.gmra.mxu0 %v525
      %v644 = vpop.f32.mrf.mxu0
      %v645 = vadd.f32 0.0, %v644
      %v646 = vpop.f32.mrf.mxu0
      %647 = vmatprep.mubr.f32.mxu0 0.0
      %648 = vmatmul.mubr.f32.gmra.mxu0 %v528
      %v649 = vpop.f32.mrf.mxu0
      %v650 = vadd.f32 0.0, %v649
      %v651 = vpop.f32.mrf.mxu0
      %652 = vmatprep.mubr.f32.mxu0 0.0
      %653 = vmatmul.mubr.f32.gmra.mxu0 %v531
      %v654 = vpop.f32.mrf.mxu0
      %v655 = vadd.f32 0.0, %v654
      %v656 = vpop.f32.mrf.mxu0
      %657 = vmatprep.mubr.f32.mxu0 0.0
      %658 = vmatmul.mubr.f32.gmra.mxu0 %v534
      %v659 = vpop.f32.mrf.mxu0
      %v660 = vadd.f32 0.0, %v659
      %v661 = vpop.f32.mrf.mxu0
      %662 = vmatprep.mubr.f32.mxu0 0.0
      %663 = vmatmul.mubr.f32.gmra.mxu0 %v537
      %v664 = vpop.f32.mrf.mxu0
      %v665 = vadd.f32 0.0, %v664
      %v666 = vpop.f32.mrf.mxu0
      %667 = vmatprep.mubr.f32.mxu0 0.0
      %668 = vmatmul.mubr.f32.gmra.mxu0 %v540
      %v669 = vpop.f32.mrf.mxu0
      %v670 = vadd.f32 0.0, %v669
      %v671 = vpop.f32.mrf.mxu0
      %672 = vmatprep.mubr.f32.mxu0 0.0
      %673 = vmatmul.mubr.f32.gmra.mxu0 %v543
      %v674 = vpop.f32.mrf.mxu0
      %v675 = vadd.f32 0.0, %v674
      %v676 = vpop.f32.mrf.mxu0
      %677 = vmatprep.mubr.f32.mxu0 0.0
      %678 = vmatmul.mubr.f32.gmra.mxu0 %v546
      %v679 = vpop.f32.mrf.mxu0
      %v680 = vadd.f32 0.0, %v679
      %v681 = vpop.f32.mrf.mxu0
      %682 = vmatprep.mubr.f32.mxu0 0.0
      %683 = vmatmul.mubr.f32.gmra.mxu0 %v549
      %v684 = vpop.f32.mrf.mxu0
      %v685 = vadd.f32 0.0, %v684
      %v686 = vpop.f32.mrf.mxu0
      %687 = vmatprep.mubr.f32.mxu0 0.0
      %688 = vmatmul.mubr.f32.gmra.mxu0 %v552
      %v689 = vpop.f32.mrf.mxu0
      %v690 = vadd.f32 0.0, %v689
      %v691 = vpop.f32.mrf.mxu0
      %692 = vmatprep.mubr.f32.mxu0 0.0
      %693 = vmatmul.mubr.f32.gmra.mxu0 %v555
      %v694 = vpop.f32.mrf.mxu0
      %v695 = vadd.f32 0.0, %v694
      %v696 = vpop.f32.mrf.mxu0
      %697 = vmatprep.mubr.f32.mxu0 0.0
      %698 = vmatmul.mubr.f32.gmra.mxu0 %v558
      %v699 = vpop.f32.mrf.mxu0
      %v700 = vadd.f32 0.0, %v699
      %v701 = vpop.f32.mrf.mxu0
      %702 = vmatprep.mubr.f32.mxu0 0.0
      %703 = vmatmul.mubr.f32.gmra.mxu0 %v561
      %v704 = vpop.f32.mrf.mxu0
      %v705 = vadd.f32 0.0, %v704
      %v706 = vpop.f32.mrf.mxu0
      %707 = vdwg.mxu0
      %vm708 = vcmp.ne.f32.partialorder %v257, 0.0
      %vm709 = vcmp.ne.f32.partialorder %v258, 0.0
      %vm710 = vcmp.ne.f32.partialorder %v259, 0.0
      %vm711 = vcmp.ne.f32.partialorder %v260, 0.0
      %vm712 = vcmp.ne.f32.partialorder %v261, 0.0
      %vm713 = vcmp.ne.f32.partialorder %v262, 0.0
      %vm714 = vcmp.ne.f32.partialorder %v263, 0.0
      %vm715 = vcmp.ne.f32.partialorder %v264, 0.0
      %vm716 = vcmp.ne.f32.partialorder %v265, 0.0
      %vm717 = vcmp.ne.f32.partialorder %v266, 0.0
      %vm718 = vcmp.ne.f32.partialorder %v267, 0.0
      %vm719 = vcmp.ne.f32.partialorder %v268, 0.0
      %vm720 = vcmp.ne.f32.partialorder %v269, 0.0
      %vm721 = vcmp.ne.f32.partialorder %v270, 0.0
      %vm722 = vcmp.ne.f32.partialorder %v271, 0.0
      %vm723 = vcmp.ne.f32.partialorder %v272, 0.0
      %v724 = vsel %vm708, 1, 0
      %v725 = vsel %vm709, 1, 0
      %v726 = vsel %vm710, 1, 0
      %v727 = vsel %vm711, 1, 0
      %v728 = vsel %vm712, 1, 0
      %v729 = vsel %vm713, 1, 0
      %v730 = vsel %vm714, 1, 0
      %v731 = vsel %vm715, 1, 0
      %v732 = vsel %vm716, 1, 0
      %v733 = vsel %vm717, 1, 0
      %v734 = vsel %vm718, 1, 0
      %v735 = vsel %vm719, 1, 0
      %v736 = vsel %vm720, 1, 0
      %v737 = vsel %vm721, 1, 0
      %v738 = vsel %vm722, 1, 0
      %v739 = vsel %vm723, 1, 0
      %740 = vset.pattern.permute.xlu0 0
      %741 = vperm.xlu0 %740, %v724
      %v742 = vpop.permute.xlu0 %741
      %743 = vset.pattern.permute.xlu0 0
      %744 = vperm.xlu0 %743, %v725
      %v745 = vpop.permute.xlu0 %744
      %746 = vset.pattern.permute.xlu0 0
      %747 = vperm.xlu0 %746, %v726
      %v748 = vpop.permute.xlu0 %747
      %749 = vset.pattern.permute.xlu0 0
      %750 = vperm.xlu0 %749, %v727
      %v751 = vpop.permute.xlu0 %750
      %752 = vset.pattern.permute.xlu0 0
      %753 = vperm.xlu0 %752, %v728
      %v754 = vpop.permute.xlu0 %753
      %755 = vset.pattern.permute.xlu0 0
      %756 = vperm.xlu0 %755, %v729
      %v757 = vpop.permute.xlu0 %756
      %758 = vset.pattern.permute.xlu0 0
      %759 = vperm.xlu0 %758, %v730
      %v760 = vpop.permute.xlu0 %759
      %761 = vset.pattern.permute.xlu0 0
      %762 = vperm.xlu0 %761, %v731
      %v763 = vpop.permute.xlu0 %762
      %764 = vset.pattern.permute.xlu0 0
      %765 = vperm.xlu0 %764, %v732
      %v766 = vpop.permute.xlu0 %765
      %767 = vset.pattern.permute.xlu0 0
      %768 = vperm.xlu0 %767, %v733
      %v769 = vpop.permute.xlu0 %768
      %770 = vset.pattern.permute.xlu0 0
      %771 = vperm.xlu0 %770, %v734
      %v772 = vpop.permute.xlu0 %771
      %773 = vset.pattern.permute.xlu0 0
      %774 = vperm.xlu0 %773, %v735
      %v775 = vpop.permute.xlu0 %774
      %776 = vset.pattern.permute.xlu0 0
      %777 = vperm.xlu0 %776, %v736
      %v778 = vpop.permute.xlu0 %777
      %779 = vset.pattern.permute.xlu0 0
      %780 = vperm.xlu0 %779, %v737
      %v781 = vpop.permute.xlu0 %780
      %782 = vset.pattern.permute.xlu0 0
      %783 = vperm.xlu0 %782, %v738
      %v784 = vpop.permute.xlu0 %783
      %785 = vset.pattern.permute.xlu0 0
      %786 = vperm.xlu0 %785, %v739
      %v787 = vpop.permute.xlu0 %786
      %vm788 = vcmp.eq.s32.totalorder %v742, 1
      %vm789 = vcmp.eq.s32.totalorder %v745, 1
      %vm790 = vcmp.eq.s32.totalorder %v748, 1
      %vm791 = vcmp.eq.s32.totalorder %v751, 1
      %vm792 = vcmp.eq.s32.totalorder %v754, 1
      %vm793 = vcmp.eq.s32.totalorder %v757, 1
      %vm794 = vcmp.eq.s32.totalorder %v760, 1
      %vm795 = vcmp.eq.s32.totalorder %v763, 1
      %vm796 = vcmp.eq.s32.totalorder %v766, 1
      %vm797 = vcmp.eq.s32.totalorder %v769, 1
      %vm798 = vcmp.eq.s32.totalorder %v772, 1
      %vm799 = vcmp.eq.s32.totalorder %v775, 1
      %vm800 = vcmp.eq.s32.totalorder %v778, 1
      %vm801 = vcmp.eq.s32.totalorder %v781, 1
      %vm802 = vcmp.eq.s32.totalorder %v784, 1
      %vm803 = vcmp.eq.s32.totalorder %v787, 1
      %vm804 = vmand %vm225, %vm788
      %vm805 = vmand %vm226, %vm789
      %vm806 = vmand %vm227, %vm790
      %vm807 = vmand %vm228, %vm791
      %vm808 = vmand %vm229, %vm792
      %vm809 = vmand %vm230, %vm793
      %vm810 = vmand %vm231, %vm794
      %vm811 = vmand %vm232, %vm795
      %vm812 = vmand %vm233, %vm796
      %vm813 = vmand %vm234, %vm797
      %vm814 = vmand %vm235, %vm798
      %vm815 = vmand %vm236, %vm799
      %vm816 = vmand %vm237, %vm800
      %vm817 = vmand %vm238, %vm801
      %vm818 = vmand %vm239, %vm802
      %vm819 = vmand %vm240, %vm803
      %v820 = vsel %vm804, %v630, -100.0
      %v821 = vsel %vm805, %v635, -100.0
      %v822 = vsel %vm806, %v640, -100.0
      %v823 = vsel %vm807, %v645, -100.0
      %v824 = vsel %vm808, %v650, -100.0
      %v825 = vsel %vm809, %v655, -100.0
      %v826 = vsel %vm810, %v660, -100.0
      %v827 = vsel %vm811, %v665, -100.0
      %v828 = vsel %vm812, %v670, -100.0
      %v829 = vsel %vm813, %v675, -100.0
      %v830 = vsel %vm814, %v680, -100.0
      %v831 = vsel %vm815, %v685, -100.0
      %v832 = vsel %vm816, %v690, -100.0
      %v833 = vsel %vm817, %v695, -100.0
      %v834 = vsel %vm818, %v700, -100.0
      %v835 = vsel %vm819, %v705, -100.0
      %v836 = vmax.f32 %v820, %v824
      %v837 = vmax.f32 %v821, %v825
      %v838 = vmax.f32 %v822, %v826
      %v839 = vmax.f32 %v823, %v827
      %v840 = vmax.f32 %v836, %v828
      %v841 = vmax.f32 %v837, %v829
      %v842 = vmax.f32 %v838, %v830
      %v843 = vmax.f32 %v839, %v831
      %v844 = vmax.f32 %v840, %v832
      %v845 = vmax.f32 %v841, %v833
      %v846 = vmax.f32 %v842, %v834
      %v847 = vmax.f32 %v843, %v835
      %v848 = vmax.f32 %v844, %v845
      %v849 = vmax.f32 %v846, %v847
      %v850 = vmax.f32 %v848, %v849
      %v851 = vrot.slane %v850, 4
      %v852 = vmax.f32 %v850, %v851
      %v853 = vrot.slane %v852, 2
      %v854 = vmax.f32 %v852, %v853
      %v855 = vrot.slane %v854, 1
      %v856 = vmax.f32 %v854, %v855
      %v857 = vmul.f32 %v856, 1.442695
      %v858 = vpow.pop %v857
      %v859 = vmul.f32 %v273, %v858
      %vm860 = vcmp.eq.f32.partialorder %v820, %v856
      %vm861 = vcmp.eq.f32.partialorder %v821, %v856
      %vm862 = vcmp.eq.f32.partialorder %v822, %v856
      %vm863 = vcmp.eq.f32.partialorder %v823, %v856
      %vm864 = vcmp.eq.f32.partialorder %v824, %v856
      %vm865 = vcmp.eq.f32.partialorder %v825, %v856
      %vm866 = vcmp.eq.f32.partialorder %v826, %v856
      %vm867 = vcmp.eq.f32.partialorder %v827, %v856
      %vm868 = vcmp.eq.f32.partialorder %v828, %v856
      %vm869 = vcmp.eq.f32.partialorder %v829, %v856
      %vm870 = vcmp.eq.f32.partialorder %v830, %v856
      %vm871 = vcmp.eq.f32.partialorder %v831, %v856
      %vm872 = vcmp.eq.f32.partialorder %v832, %v856
      %vm873 = vcmp.eq.f32.partialorder %v833, %v856
      %vm874 = vcmp.eq.f32.partialorder %v834, %v856
      %vm875 = vcmp.eq.f32.partialorder %v835, %v856
      %v877 = vlaneseq
      %v878 = vshrl.u32 %v877, 7
      %v879 = vsub.s32 0, %v878
      %v880 = vrot.slane %v859, %v879
      %v882 = vsel %vm860, %v880, 0.0
      %v883 = vsel %vm861, %v880, 0.0
      %v884 = vsel %vm862, %v880, 0.0
      %v885 = vsel %vm863, %v880, 0.0
      %v886 = vsel %vm864, %v880, 0.0
      %v887 = vsel %vm865, %v880, 0.0
      %v888 = vsel %vm866, %v880, 0.0
      %v889 = vsel %vm867, %v880, 0.0
      %v890 = vsel %vm868, %v880, 0.0
      %v891 = vsel %vm869, %v880, 0.0
      %v892 = vsel %vm870, %v880, 0.0
      %v893 = vsel %vm871, %v880, 0.0
      %v894 = vsel %vm872, %v880, 0.0
      %v895 = vsel %vm873, %v880, 0.0
      %v896 = vsel %vm874, %v880, 0.0
      %v897 = vsel %vm875, %v880, 0.0
      %898 = vadd.xlane.f32.xlu0 %v882
      %v899 = vpop.xlane.xlu0 %898
      %900 = vadd.xlane.f32.xlu0 %v883
      %v901 = vpop.xlane.xlu0 %900
      %902 = vadd.xlane.f32.xlu0 %v884
      %v903 = vpop.xlane.xlu0 %902
      %904 = vadd.xlane.f32.xlu0 %v885
      %v905 = vpop.xlane.xlu0 %904
      %906 = vadd.xlane.f32.xlu0 %v886
      %v907 = vpop.xlane.xlu0 %906
      %908 = vadd.xlane.f32.xlu0 %v887
      %v909 = vpop.xlane.xlu0 %908
      %910 = vadd.xlane.f32.xlu0 %v888
      %v911 = vpop.xlane.xlu0 %910
      %912 = vadd.xlane.f32.xlu0 %v889
      %v913 = vpop.xlane.xlu0 %912
      %914 = vadd.xlane.f32.xlu0 %v890
      %v915 = vpop.xlane.xlu0 %914
      %916 = vadd.xlane.f32.xlu0 %v891
      %v917 = vpop.xlane.xlu0 %916
      %918 = vadd.xlane.f32.xlu0 %v892
      %v919 = vpop.xlane.xlu0 %918
      %920 = vadd.xlane.f32.xlu0 %v893
      %v921 = vpop.xlane.xlu0 %920
      %922 = vadd.xlane.f32.xlu0 %v894
      %v923 = vpop.xlane.xlu0 %922
      %924 = vadd.xlane.f32.xlu0 %v895
      %v925 = vpop.xlane.xlu0 %924
      %926 = vadd.xlane.f32.xlu0 %v896
      %v927 = vpop.xlane.xlu0 %926
      %928 = vadd.xlane.f32.xlu0 %v897
      %v929 = vpop.xlane.xlu0 %928
      %v930 = vadd.f32 %v899, 2.7182817
      %v931 = vadd.f32 %v901, 2.7182817
      %v932 = vadd.f32 %v903, 2.7182817
      %v933 = vadd.f32 %v905, 2.7182817
      %v934 = vadd.f32 %v907, 2.7182817
      %v935 = vadd.f32 %v909, 2.7182817
      %v936 = vadd.f32 %v911, 2.7182817
      %v937 = vadd.f32 %v913, 2.7182817
      %v938 = vadd.f32 %v915, 2.7182817
      %v939 = vadd.f32 %v917, 2.7182817
      %v940 = vadd.f32 %v919, 2.7182817
      %v941 = vadd.f32 %v921, 2.7182817
      %v942 = vadd.f32 %v923, 2.7182817
      %v943 = vadd.f32 %v925, 2.7182817
      %v944 = vadd.f32 %v927, 2.7182817
      %v945 = vadd.f32 %v929, 2.7182817
      %v946 = vpack.c.bf16 %v883, %v882
      %v947 = vpack.c.bf16 %v885, %v884
      %v948 = vpack.c.bf16 %v887, %v886
      %v949 = vpack.c.bf16 %v889, %v888
      %v950 = vpack.c.bf16 %v891, %v890
      %v951 = vpack.c.bf16 %v893, %v892
      %v952 = vpack.c.bf16 %v895, %v894
      %v953 = vpack.c.bf16 %v897, %v896
      %v954 = vpack.c.bf16 %v242, %v241
      %v955 = vpack.c.bf16 %v244, %v243
      %v956 = vpack.c.bf16 %v246, %v245
      %v957 = vpack.c.bf16 %v248, %v247
      %v958 = vpack.c.bf16 %v250, %v249
      %v959 = vpack.c.bf16 %v252, %v251
      %v960 = vpack.c.bf16 %v254, %v253
      %v961 = vpack.c.bf16 %v256, %v255
      %962 = vmatprep.subr.bf16.mxu0 0
      %963 = vmatpush1.bf16.msra.mxu0 %v961
      %964 = vmatprep.subr.bf16.mxu0 0
      %965 = vmatpush1.bf16.msra.mxu0 %v960
      %966 = vmatprep.subr.bf16.mxu0 0
      %967 = vmatpush1.bf16.msra.mxu0 %v959
      %968 = vmatprep.subr.bf16.mxu0 0
      %969 = vmatpush1.bf16.msra.mxu0 %v958
      %970 = vmatprep.subr.bf16.mxu0 0
      %971 = vmatpush1.bf16.msra.mxu0 %v957
      %972 = vmatprep.subr.bf16.mxu0 0
      %973 = vmatpush1.bf16.msra.mxu0 %v956
      %974 = vmatprep.subr.bf16.mxu0 0
      %975 = vmatpush1.bf16.msra.mxu0 %v955
      %976 = vmatprep.subr.bf16.mxu0 0
      %977 = vmatpush1.bf16.msra.mxu0 %v954
      %978 = vmatprep.subr.bf16.mxu0 0
      %979 = vmatpush2.bf16.msra.mxu0 0
      %980 = vmatprep.subr.bf16.mxu0 0
      %981 = vmatpush2.bf16.msra.mxu0 0
      %982 = vmatprep.subr.bf16.mxu0 0
      %983 = vmatpush2.bf16.msra.mxu0 0
      %984 = vmatprep.subr.bf16.mxu0 0
      %985 = vmatpush2.bf16.msra.mxu0 0
      %986 = vmatprep.subr.bf16.mxu0 0
      %987 = vmatpush2.bf16.msra.mxu0 0
      %988 = vmatprep.subr.bf16.mxu0 0
      %989 = vmatpush2.bf16.msra.mxu0 0
      %990 = vmatprep.subr.bf16.mxu0 0
      %991 = vmatpush2.bf16.msra.mxu0 0
      %992 = vmatprep.subr.bf16.mxu0 0
      %993 = vmatpush2.bf16.msra.mxu0 0
      %994 = vmatprep.mubr.bf16.mxu0 0
      %995 = vmatmul.mubr.bf16.gmra.mxu0 %v946
      %v996 = vpop.f32.mrf.mxu0
      %v997 = vadd.f32 0.0, %v996
      %v998 = vpop.f32.mrf.mxu0
      %v999 = vpop.f32.mrf.mxu0
      %v1000 = vadd.f32 0.0, %v999
      %v1001 = vpop.f32.mrf.mxu0
      %1002 = vmatprep.mubr.bf16.mxu0 0
      %1003 = vmatmul.mubr.bf16.gmra.mxu0 %v947
      %v1004 = vpop.f32.mrf.mxu0
      %v1005 = vadd.f32 0.0, %v1004
      %v1006 = vpop.f32.mrf.mxu0
      %v1007 = vpop.f32.mrf.mxu0
      %v1008 = vadd.f32 0.0, %v1007
      %v1009 = vpop.f32.mrf.mxu0
      %1010 = vmatprep.mubr.bf16.mxu0 0
      %1011 = vmatmul.mubr.bf16.gmra.mxu0 %v948
      %v1012 = vpop.f32.mrf.mxu0
      %v1013 = vadd.f32 0.0, %v1012
      %v1014 = vpop.f32.mrf.mxu0
      %v1015 = vpop.f32.mrf.mxu0
      %v1016 = vadd.f32 0.0, %v1015
      %v1017 = vpop.f32.mrf.mxu0
      %1018 = vmatprep.mubr.bf16.mxu0 0
      %1019 = vmatmul.mubr.bf16.gmra.mxu0 %v949
      %v1020 = vpop.f32.mrf.mxu0
      %v1021 = vadd.f32 0.0, %v1020
      %v1022 = vpop.f32.mrf.mxu0
      %v1023 = vpop.f32.mrf.mxu0
      %v1024 = vadd.f32 0.0, %v1023
      %v1025 = vpop.f32.mrf.mxu0
      %1026 = vmatprep.mubr.bf16.mxu0 0
      %1027 = vmatmul.mubr.bf16.gmra.mxu0 %v950
      %v1028 = vpop.f32.mrf.mxu0
      %v1029 = vadd.f32 0.0, %v1028
      %v1030 = vpop.f32.mrf.mxu0
      %v1031 = vpop.f32.mrf.mxu0
      %v1032 = vadd.f32 0.0, %v1031
      %v1033 = vpop.f32.mrf.mxu0
      %1034 = vmatprep.mubr.bf16.mxu0 0
      %1035 = vmatmul.mubr.bf16.gmra.mxu0 %v951
      %v1036 = vpop.f32.mrf.mxu0
      %v1037 = vadd.f32 0.0, %v1036
      %v1038 = vpop.f32.mrf.mxu0
      %v1039 = vpop.f32.mrf.mxu0
      %v1040 = vadd.f32 0.0, %v1039
      %v1041 = vpop.f32.mrf.mxu0
      %1042 = vmatprep.mubr.bf16.mxu0 0
      %1043 = vmatmul.mubr.bf16.gmra.mxu0 %v952
      %v1044 = vpop.f32.mrf.mxu0
      %v1045 = vadd.f32 0.0, %v1044
      %v1046 = vpop.f32.mrf.mxu0
      %v1047 = vpop.f32.mrf.mxu0
      %v1048 = vadd.f32 0.0, %v1047
      %v1049 = vpop.f32.mrf.mxu0
      %1050 = vmatprep.mubr.bf16.mxu0 0
      %1051 = vmatmul.mubr.bf16.gmra.mxu0 %v953
      %v1052 = vpop.f32.mrf.mxu0
      %v1053 = vadd.f32 0.0, %v1052
      %v1054 = vpop.f32.mrf.mxu0
      %v1055 = vpop.f32.mrf.mxu0
      %v1056 = vadd.f32 0.0, %v1055
      %v1057 = vpop.f32.mrf.mxu0
      %1058 = vdwg.mxu0
      %v1059 = vmul.f32 %v241, 2.7182817
      %v1060 = vmul.f32 %v242, 2.7182817
      %v1061 = vmul.f32 %v243, 2.7182817
      %v1062 = vmul.f32 %v244, 2.7182817
      %v1063 = vmul.f32 %v245, 2.7182817
      %v1064 = vmul.f32 %v246, 2.7182817
      %v1065 = vmul.f32 %v247, 2.7182817
      %v1066 = vmul.f32 %v248, 2.7182817
      %v1067 = vmul.f32 %v249, 2.7182817
      %v1068 = vmul.f32 %v250, 2.7182817
      %v1069 = vmul.f32 %v251, 2.7182817
      %v1070 = vmul.f32 %v252, 2.7182817
      %v1071 = vmul.f32 %v253, 2.7182817
      %v1072 = vmul.f32 %v254, 2.7182817
      %v1073 = vmul.f32 %v255, 2.7182817
      %v1074 = vmul.f32 %v256, 2.7182817
      %v1075 = vadd.f32 %v1059, %v997
      %v1076 = vadd.f32 %v1060, %v1000
      %v1077 = vadd.f32 %v1061, %v1005
      %v1078 = vadd.f32 %v1062, %v1008
      %v1079 = vadd.f32 %v1063, %v1013
      %v1080 = vadd.f32 %v1064, %v1016
      %v1081 = vadd.f32 %v1065, %v1021
      %v1082 = vadd.f32 %v1066, %v1024
      %v1083 = vadd.f32 %v1067, %v1029
      %v1084 = vadd.f32 %v1068, %v1032
      %v1085 = vadd.f32 %v1069, %v1037
      %v1086 = vadd.f32 %v1070, %v1040
      %v1087 = vadd.f32 %v1071, %v1045
      %v1088 = vadd.f32 %v1072, %v1048
      %v1089 = vadd.f32 %v1073, %v1053
      %v1090 = vadd.f32 %v1074, %v1056
      %v1091 = vrcp.pop %v930
      %v1092 = vrcp.pop %v931
      %v1093 = vrcp.pop %v932
      %v1094 = vrcp.pop %v933
      %v1095 = vrcp.pop %v934
      %v1096 = vrcp.pop %v935
      %v1097 = vrcp.pop %v936
      %v1098 = vrcp.pop %v937
      %v1099 = vrcp.pop %v938
      %v1100 = vrcp.pop %v939
      %v1101 = vrcp.pop %v940
      %v1102 = vrcp.pop %v941
      %v1103 = vrcp.pop %v942
      %v1104 = vrcp.pop %v943
      %v1105 = vrcp.pop %v944
      %v1106 = vrcp.pop %v945
      %v1107 = vmul.f32 %v1075, %v1091
      %v1108 = vmul.f32 %v1076, %v1092
      %v1109 = vmul.f32 %v1077, %v1093
      %v1110 = vmul.f32 %v1078, %v1094
      %v1111 = vmul.f32 %v1079, %v1095
      %v1112 = vmul.f32 %v1080, %v1096
      %v1113 = vmul.f32 %v1081, %v1097
      %v1114 = vmul.f32 %v1082, %v1098
      %v1115 = vmul.f32 %v1083, %v1099
      %v1116 = vmul.f32 %v1084, %v1100
      %v1117 = vmul.f32 %v1085, %v1101
      %v1118 = vmul.f32 %v1086, %v1102
      %v1119 = vmul.f32 %v1087, %v1103
      %v1120 = vmul.f32 %v1088, %v1104
      %v1121 = vmul.f32 %v1089, %v1105
      %v1122 = vmul.f32 %v1090, %v1106
      %1123 = vst.msk [vmem:[%s204] sm:$0xff] %vm290, %v1107
      %1124 = vst.msk [vmem:[%s204 + $0x8] sm:$0xff] %vm290, %v1108
      %1125 = vst.msk [vmem:[%s204 + $0x10] sm:$0xff] %vm290, %v1109
      %1126 = vst.msk [vmem:[%s204 + $0x18] sm:$0xff] %vm290, %v1110
      %1127 = vst.msk [vmem:[%s204 + $0x20] sm:$0xff] %vm290, %v1111
      %1128 = vst.msk [vmem:[%s204 + $0x28] sm:$0xff] %vm290, %v1112
      %1129 = vst.msk [vmem:[%s204 + $0x30] sm:$0xff] %vm290, %v1113
      %1130 = vst.msk [vmem:[%s204 + $0x38] sm:$0xff] %vm290, %v1114
      %1131 = vst.msk [vmem:[%s204 + $0x40] sm:$0xff] %vm290, %v1115
      %1132 = vst.msk [vmem:[%s204 + $0x48] sm:$0xff] %vm290, %v1116
      %1133 = vst.msk [vmem:[%s204 + $0x50] sm:$0xff] %vm290, %v1117
      %1134 = vst.msk [vmem:[%s204 + $0x58] sm:$0xff] %vm290, %v1118
      %1135 = vst.msk [vmem:[%s204 + $0x60] sm:$0xff] %vm290, %v1119
      %1136 = vst.msk [vmem:[%s204 + $0x68] sm:$0xff] %vm290, %v1120
      %1137 = vst.msk [vmem:[%s204 + $0x70] sm:$0xff] %vm290, %v1121
      %1138 = vst.msk [vmem:[%s204 + $0x78] sm:$0xff] %vm290, %v1122
      %p1139 = scmp.lt.s32.totalorder %s14, 1
      %s1140 = scalar_select %p1139, %s14, 1
      %s1141 = smul.addr %s1140, 16
      %s1142 = smul.addr %s1141, 8
      %s1143 = scalar_lea.vmem %s3, %s1142
      // Predicated region
      $region33: #{tpu_custom_call.1} parent=31 // pred_check
        %p1144 = pneg %p110
      $region34: #{tpu_custom_call.1} parent=31 // pred_check_branch
        %1146 = sbr.rel (%p1144) target = $region36
      $region35: #{tpu_custom_call.1} parent=31 // pred_region
        _
      $region36: #{tpu_custom_call.1} parent=31 // pred_fallthru
        _
    $region32: #{tpu_custom_call.1} parent=5 // pred_fallthru
      _
    %p1147 = scmp.le.s32.totalorder 2, %s9
    // Predicated region
    $region37: #{tpu_custom_call.1} parent=5 // pred_check
      %p1148 = pneg %p1147
    $region38: #{tpu_custom_call.1} parent=5 // pred_check_branch
      %1150 = sbr.rel (%p1148) target = $region40
    $region39: #{tpu_custom_call.1} parent=5 // pred_region
      %s1151 = ssub.s32 %s9, 2
      // Predicated region
      $region41: #{tpu_custom_call.1} parent=39 // pred_check
        %p1152 = pneg %p116
      $region42: #{tpu_custom_call.1} parent=39 // pred_check_branch
        %1154 = sbr.rel (%p1152) target = $region44
      $region43: #{tpu_custom_call.1} parent=39 // pred_region
        %p1155 = scmp.lt.s32.totalorder %s15, 1
        %s1156 = scalar_select %p1155, %s15, 1
        %s1157 = smul.addr %s1156, 16
        %s1158 = smul.addr %s1157, 8
        %s1159 = scalar_lea.vmem %s3, %s1158
      $region44: #{tpu_custom_call.1} parent=39 // pred_fallthru
        _
    $region40: #{tpu_custom_call.1} parent=5 // pred_fallthru
      _
  $region6: #{tpu_custom_call.1} parent=0 // loop_footer
    %s13 = sadd.s32 1, %s9
  $region7: #{tpu_custom_call.1} parent=0 // loop_footer_branch
    %8 = sbr.rel target = $region3
  $region8: #{tpu_custom_call.1} parent=0 // loop_exit
    _

</llo_original>
